<compile_context>
chip_gen: v6e
topology: v6e:2x2x1
jax: 0.10.0
libtpu: 0.0.40
codegen_flags: <defaults>
</compile_context>

<pallas_src>
import jax
import jax.numpy as jnp
from jax import lax
from jax.experimental import pallas as pl
from jax.experimental.pallas import tpu as pltpu


# ------------------------------------------------------------------ tile selection
def _pick_tile_h(H, W, hidden_dim, stride, tile_h):
    """Largest row tile tH (divisor of H) whose f32 stencil temporaries fit a VMEM budget,
    with tH*W a multiple of 128 so tiled output stores stay lane-dense/unmasked."""
    if tile_h is not None:
        assert H % tile_h == 0, "tile_h must divide H"
        if tile_h != H:
            assert stride == 1, "row tiling only implemented for stride==1"
            assert (tile_h * W) % 128 == 0, "tile_h*W must be a multiple of 128"
        return tile_h
    if stride != 1:
        return H
    budget = 24 * 1024 * 1024            # bytes of in-kernel f32 temporaries per step
    per_row = hidden_dim * W * 4 * 8     # ~8 live (hidden, tile) f32 arrays
    divisors = sorted((d for d in range(1, H + 1) if H % d == 0), reverse=True)
    candidates = [d for d in divisors if d == H or (d * W) % 128 == 0]
    for d in candidates:
        if (d + 2) * per_row <= budget:
            return d
    return candidates[-1]


# ------------------------------------------------------------------ kernel
def _make_kernel(*, stride, expand_ratio, identity, inp, W, tile_h):
    TW = tile_h * W                     # core tile width (flattened spatial lanes)

    def kernel(*refs):
        if expand_ratio != 1:
            x_ref, m_ref, w1_ref, cpk_ref, w3_ref, b3_ref, o_ref = refs
        else:
            x_ref, m_ref, cpk_ref, w3_ref, b3_ref, o_ref = refs
            w1_ref = None

        xw = x_ref[0, 0]                # (inp, (tile_h+2)*W) bf16 halo window
        cpk = cpk_ref[...]              # (hidden, 8) f32 packed per-channel params

        # ---- expand 1x1 conv (+BN1 shift, ReLU6); BN1 scale pre-folded into w1 ----
        if expand_ratio == 1:
            hid = xw.astype(jnp.float32)
        else:
            if inp <= 8:
                # K-starved matmul -> sum of rank-1 broadcast-FMAs on the VPU.
                w1 = w1_ref[...].astype(jnp.float32)
                xf = xw.astype(jnp.float32)
                hid = w1[:, 0:1] * xf[0:1, :]
                for i in range(1, inp):
                    hid = hid + w1[:, i:i + 1] * xf[i:i + 1, :]
            else:
                hid = jnp.dot(w1_ref[...], xw, preferred_element_type=jnp.float32)
            hid = jnp.clip(hid + cpk[:, 5:6], 0.0, 6.0)

        # ---- fused (1,3)/(3,1) depthwise convs as one 5-tap per-channel stencil ----
        # hid covers rows [r0-1, r0+tile_h+1); the core tile sits at lanes [W, W+TW).
        center = hid[:, W:W + TW]
        left = hid[:, W - 1:W - 1 + TW]
        right = hid[:, W + 1:W + 1 + TW]
        up = hid[:, 0:TW]
        down = hid[:, 2 * W:2 * W + TW]

        m_l = m_ref[0:1, :]             # (1, TW) border masks, precomputed in wrapper
        m_r = m_ref[1:2, :]
        m_u = m_ref[2:3, :]
        m_d = m_ref[3:4, :]

        y = (center * cpk[:, 1:2]
             + (left * m_l) * cpk[:, 0:1]
             + (right * m_r) * cpk[:, 2:3]
             + (up * m_u) * cpk[:, 3:4]
             + (down * m_d) * cpk[:, 4:5])

        if stride == 2:
            # TODO(synk): compute only even output rows/cols instead of this
            # full-resolution stencil + in-kernel subsample relayout.
            ch = y.shape[0]
            Ho, Wo = tile_h // 2, W // 2
            y = y.reshape(ch, Ho, 2, Wo, 2)[:, :, 0, :, 0].reshape(ch, Ho * Wo)

        y = jnp.clip(y + cpk[:, 6:7], 0.0, 6.0)     # BN2 shift + ReLU6

        # ---- project 1x1 conv (BN3 scale folded into w3) + shift (+ residual) ----
        o = jnp.dot(w3_ref[...], y.astype(jnp.bfloat16),
                    preferred_element_type=jnp.float32) + b3_ref[...]
        if identity:
            o = o + xw[:, W:W + TW].astype(jnp.float32)
        o_ref[0] = o.astype(o_ref.dtype)

    return kernel


# ------------------------------------------------------------------ wrapper
def inverted_residual_half(x_nchw, kp, *, stride, expand_ratio, inp, oup, hidden_dim,
                           tile_h=None):
    N, C, H, W = x_nchw.shape
    assert C == inp and stride in (1, 2) and hidden_dim % 2 == 0
    if stride == 2:
        assert H % 2 == 0 and W % 2 == 0, "stride-2 path requires even H and W"
    if expand_ratio == 1:
        assert hidden_dim == inp, "expand_ratio==1 requires hidden_dim == inp"
    identity = (stride == 1) and (inp == oup)
    Ho, Wo = H // stride, W // stride
    HW, HWo = H * W, Ho * Wo

    tH = _pick_tile_h(H, W, hidden_dim, stride, tile_h)
    nH = H // tH
    TW = tH * W                         # input-resolution tile width (lanes)
    EW = (tH + 2) * W                   # tile width including the +-1 row halo
    TWo = (tH // stride) * Wo           # output tile width

    # bf16 input (halves DMA bytes); zero-pad one row top+bottom; cut into per-tile halo
    # windows so every grid step reads one contiguous, fully static block.
    xb = x_nchw.astype(jnp.bfloat16)
    xp = jnp.pad(xb, ((0, 0), (0, 0), (1, 1), (0, 0))).reshape(N, inp, (H + 2) * W)
    xe = jnp.stack([xp[:, :, h * TW:h * TW + EW] for h in range(nH)], axis=1)
    # xe: (N, nH, inp, EW)

    # Border masks over the flattened spatial axis, precomputed once:
    # rows = [left exists, right exists, up exists, down exists].
    pos = jnp.arange(HW, dtype=jnp.int32)
    col, row = pos % W, pos // W
    masks = jnp.stack([col > 0, col < W - 1, row > 0, row < H - 1]).astype(jnp.float32)

    kernel = _make_kernel(stride=stride, expand_ratio=expand_ratio, identity=identity,
                          inp=inp, W=W, tile_h=tH)

    def _resident(a):                   # full-block resident weight
        nd = a.ndim
        return pl.BlockSpec(a.shape, lambda n, h: (0,) * nd)

    weight_args = []
    if expand_ratio != 1:
        weight_args.append(kp["w1"])    # (hidden, inp) bf16
    weight_args += [kp["cpk"], kp["w3"], kp["b3"]]

    in_specs = [pl.BlockSpec((1, 1, inp, EW), lambda n, h: (n, h, 0, 0)),
                pl.BlockSpec((4, TW), lambda n, h: (0, h))]
    in_specs += [_resident(a) for a in weight_args]

    out = pl.pallas_call(
        kernel,
        out_shape=jax.ShapeDtypeStruct((N, oup, HWo), jnp.float32),
        grid_spec=pltpu.PrefetchScalarGridSpec(
            num_scalar_prefetch=0,
            grid=(N, nH),
            in_specs=in_specs,
            out_specs=pl.BlockSpec((1, oup, TWo), lambda n, h: (n, 0, h)),
        ),
        compiler_params=pltpu.CompilerParams(
            # image tiles are fully independent -> megacore-shard both axes
            dimension_semantics=("parallel", "parallel"),
            vmem_limit_bytes=64 * 1024 * 1024,
        ),
    )(xe, masks, *weight_args)

    return out.reshape(N, oup, Ho, Wo)  # already NCHW; reshape is free


# ------------------------------------------------------------------ params
def init_raw_params(key, inp, oup, hidden_dim):
    """Module-like parameters: conv weights + BN (already reduced to scale/shift)."""
    hd = hidden_dim // 2
    ks = jax.random.split(key, 8)

    def bn(k, c):
        k1, k2, k3, k4 = jax.random.split(k, 4)
        gamma = 1.0 + 0.1 * jax.random.normal(k1, (c,))
        beta = 0.1 * jax.random.normal(k2, (c,))
        mean = 0.1 * jax.random.normal(k3, (c,))
        var = 1.0 + 0.5 * jax.random.uniform(k4, (c,))
        scale = gamma / jnp.sqrt(var + 1e-5)
        shift = beta - mean * scale
        return scale.astype(jnp.float32), shift.astype(jnp.float32)

    w1 = (0.2 * jax.random.normal(ks[0], (hidden_dim, inp))).astype(jnp.float32)
    s1, b1 = bn(ks[1], hidden_dim)
    wh = (0.3 * jax.random.normal(ks[2], (hd, 3))).astype(jnp.float32)   # taps w-1,w,w+1
    s2h, b2h = bn(ks[3], hd)
    wv = (0.3 * jax.random.normal(ks[4], (hd, 3))).astype(jnp.float32)   # taps h-1,h,h+1
    s2v, b2v = bn(ks[5], hd)
    w3 = (0.2 * jax.random.normal(ks[6], (oup, hidden_dim))).astype(jnp.float32)
    s3, b3 = bn(ks[7], oup)
    return dict(w1=w1, s1=s1, b1=b1, wh=wh, s2h=s2h, b2h=b2h,
                wv=wv, s2v=s2v, b2v=b2v, w3=w3, s3=s3, b3=b3)


def fold_params(rp, hidden_dim):
    """Fold inference-mode BN scales into the conv weights; pack per-channel vectors."""
    hd = hidden_dim // 2
    z = jnp.zeros((hd,), jnp.float32)
    s2 = jnp.concatenate([rp["s2h"], rp["s2v"]])
    wl = jnp.concatenate([rp["wh"][:, 0], z]) * s2
    wc = jnp.concatenate([rp["wh"][:, 1], rp["wv"][:, 1]]) * s2
    wr = jnp.concatenate([rp["wh"][:, 2], z]) * s2
    wu = jnp.concatenate([z, rp["wv"][:, 0]]) * s2
    wd = jnp.concatenate([z, rp["wv"][:, 2]]) * s2
    b2 = jnp.concatenate([rp["b2h"], rp["b2v"]])
    zero = jnp.zeros_like(rp["b1"])
    cpk = jnp.stack([wl, wc, wr, wu, wd, rp["b1"], b2, zero], axis=1).astype(jnp.float32)
    return dict(
        w1=(rp["w1"] * rp["s1"][:, None]).astype(jnp.bfloat16),   # (hidden, inp)
        cpk=cpk,                                                  # (hidden, 8) f32
        w3=(rp["w3"] * rp["s3"][:, None]).astype(jnp.bfloat16),   # (oup, hidden)
        b3=rp["b3"][:, None].astype(jnp.float32),                 # (oup, 1)
    )


# ------------------------------------------------------------------ pure-JAX reference
def ref_forward(x, rp, stride, expand_ratio, inp, oup, hidden_dim):
    hd = hidden_dim // 2
    dn = ("NCHW", "OIHW", "NCHW")
    if expand_ratio == 1:
        out = x
    else:
        out = lax.conv_general_dilated(
            x, rp["w1"].reshape(hidden_dim, inp, 1, 1), (1, 1), "VALID",
            dimension_numbers=dn)
        out = jnp.clip(out * rp["s1"][None, :, None, None]
                       + rp["b1"][None, :, None, None], 0.0, 6.0)
    out1, out2 = out[:, :hd], out[:, hd:]
    y1 = lax.conv_general_dilated(
        out1, rp["wh"].reshape(hd, 1, 1, 3), (stride, stride), ((0, 0), (1, 1)),
        dimension_numbers=dn, feature_group_count=hd)
    y1 = jnp.clip(y1 * rp["s2h"][None, :, None, None]
                  + rp["b2h"][None, :, None, None], 0.0, 6.0)
    y2 = lax.conv_general_dilated(
        out2, rp["wv"].reshape(hd, 1, 3, 1), (stride, stride), ((1, 1), (0, 0)),
        dimension_numbers=dn, feature_group_count=hd)
    y2 = jnp.clip(y2 * rp["s2v"][None, :, None, None]
                  + rp["b2v"][None, :, None, None], 0.0, 6.0)
    y = jnp.concatenate([y1, y2], axis=1)
    o = lax.conv_general_dilated(
        y, rp["w3"].reshape(oup, hidden_dim, 1, 1), (1, 1), "VALID",
        dimension_numbers=dn)
    o = o * rp["s3"][None, :, None, None] + rp["b3"][None, :, None, None]
    if stride == 1 and inp == oup:
        o = o + x
    return o


# ------------------------------------------------------------------ main
if __name__ == "__main__":
    inp, oup, stride, expand_ratio = 4, 4, 1, 6
    hidden_dim = int(round(inp * expand_ratio))   # 24
    N, H, W = 2, 16, 16

    key = jax.random.PRNGKey(0)
    kx, kparam = jax.random.split(key)
    x = jax.random.normal(kx, (N, inp, H, W), dtype=jnp.float32)
    raw = init_raw_params(kparam, inp, oup, hidden_dim)
    kp = fold_params(raw, hidden_dim)

    ref = ref_forward(x, raw, stride, expand_ratio, inp, oup, hidden_dim)

    # Exercise both the whole-image path (tile_h=None -> 16, nH=1) and the halo-tiled
    # path (tile_h=8 -> nH=2) and check both against the f32 reference.
    for th in (None, 8):
        out = inverted_residual_half(
            x, kp, stride=stride, expand_ratio=expand_ratio,
            inp=inp, oup=oup, hidden_dim=hidden_dim, tile_h=th)
        out = jax.block_until_ready(out)
        assert out.shape == (N, oup, H // stride, W // stride), out.shape
        err = float(jnp.max(jnp.abs(out - ref)))
        rel = float(jnp.linalg.norm(out - ref) / jnp.linalg.norm(ref))
        # bf16 matmul operands (f32 accumulation) -> looser tolerance than pure f32.
        assert err < 1e-1 and rel < 2e-2, f"tile_h={th}: max abs err {err}, rel {rel}"

    print("KERNEL_OK")
</pallas_src>

<mosaic_0001>
module attributes {stable_mosaic.version = 11 : i64} {
  func.func @kernel(%arg0: i32, %arg1: i32, %arg2: memref<1x1x4x288xbf16, #tpu.memory_space<vmem>>, %arg3: memref<4x256xf32, #tpu.memory_space<vmem>>, %arg4: memref<24x4xbf16, #tpu.memory_space<vmem>>, %arg5: memref<24x8xf32, #tpu.memory_space<vmem>>, %arg6: memref<4x24xbf16, #tpu.memory_space<vmem>>, %arg7: memref<4x1xf32, #tpu.memory_space<vmem>>, %arg8: memref<1x4x256xf32, #tpu.memory_space<vmem>>) attributes {dimension_semantics = [#tpu.dimension_semantics<parallel>, #tpu.dimension_semantics<parallel>], iteration_bounds = array<i64: 2, 1>, scalar_prefetch = 0 : i64, scratch_operands = 0 : i64, tpu.core_type = #tpu.core_type<tc>, window_params = [{transform_indices = @transform_0, window_bounds = array<i64: 1, 1, 4, 288>}, {transform_indices = @transform_1, window_bounds = array<i64: 4, 256>}, {pipeline_mode = #tpu.pipeline_mode<synchronous>, transform_indices = @transform_2, window_bounds = array<i64: 24, 4>}, {pipeline_mode = #tpu.pipeline_mode<synchronous>, transform_indices = @transform_3, window_bounds = array<i64: 24, 8>}, {pipeline_mode = #tpu.pipeline_mode<synchronous>, transform_indices = @transform_4, window_bounds = array<i64: 4, 24>}, {pipeline_mode = #tpu.pipeline_mode<synchronous>, transform_indices = @transform_5, window_bounds = array<i64: 4, 1>}, {transform_indices = @transform_6, window_bounds = array<i64: 1, 4, 256>}]} {
    %c0 = arith.constant 0 : index
    %c0_0 = arith.constant 0 : index
    %c0_1 = arith.constant 0 : index
    %c0_2 = arith.constant 0 : index
    %0 = vector.load %arg2[%c0, %c0_0, %c0_1, %c0_2] : memref<1x1x4x288xbf16, #tpu.memory_space<vmem>>, vector<1x1x4x288xbf16>
    %1 = vector.shape_cast %0 : vector<1x1x4x288xbf16> to vector<4x288xbf16>
    %c0_3 = arith.constant 0 : index
    %c0_4 = arith.constant 0 : index
    %2 = vector.load %arg5[%c0_3, %c0_4] : memref<24x8xf32, #tpu.memory_space<vmem>>, vector<24x8xf32>
    %c0_5 = arith.constant 0 : index
    %c0_6 = arith.constant 0 : index
    %3 = vector.load %arg4[%c0_5, %c0_6] : memref<24x4xbf16, #tpu.memory_space<vmem>>, vector<24x4xbf16>
    %4 = arith.extf %3 : vector<24x4xbf16> to vector<24x4xf32>
    %5 = arith.extf %1 : vector<4x288xbf16> to vector<4x288xf32>
    %6 = vector.extract_strided_slice %4 {offsets = [0, 0], sizes = [24, 1], strides = [1, 1]} : vector<24x4xf32> to vector<24x1xf32>
    %7 = vector.extract_strided_slice %5 {offsets = [0, 0], sizes = [1, 288], strides = [1, 1]} : vector<4x288xf32> to vector<1x288xf32>
    %8 = vector.broadcast %6 : vector<24x1xf32> to vector<24x288xf32>
    %9 = vector.broadcast %7 : vector<1x288xf32> to vector<24x288xf32>
    %10 = arith.mulf %8, %9 : vector<24x288xf32>
    %11 = vector.extract_strided_slice %4 {offsets = [0, 1], sizes = [24, 1], strides = [1, 1]} : vector<24x4xf32> to vector<24x1xf32>
    %12 = vector.extract_strided_slice %5 {offsets = [1, 0], sizes = [1, 288], strides = [1, 1]} : vector<4x288xf32> to vector<1x288xf32>
    %13 = vector.broadcast %11 : vector<24x1xf32> to vector<24x288xf32>
    %14 = vector.broadcast %12 : vector<1x288xf32> to vector<24x288xf32>
    %15 = arith.mulf %13, %14 : vector<24x288xf32>
    %16 = arith.addf %10, %15 : vector<24x288xf32>
    %17 = vector.extract_strided_slice %4 {offsets = [0, 2], sizes = [24, 1], strides = [1, 1]} : vector<24x4xf32> to vector<24x1xf32>
    %18 = vector.extract_strided_slice %5 {offsets = [2, 0], sizes = [1, 288], strides = [1, 1]} : vector<4x288xf32> to vector<1x288xf32>
    %19 = vector.broadcast %17 : vector<24x1xf32> to vector<24x288xf32>
    %20 = vector.broadcast %18 : vector<1x288xf32> to vector<24x288xf32>
    %21 = arith.mulf %19, %20 : vector<24x288xf32>
    %22 = arith.addf %16, %21 : vector<24x288xf32>
    %23 = vector.extract_strided_slice %4 {offsets = [0, 3], sizes = [24, 1], strides = [1, 1]} : vector<24x4xf32> to vector<24x1xf32>
    %24 = vector.extract_strided_slice %5 {offsets = [3, 0], sizes = [1, 288], strides = [1, 1]} : vector<4x288xf32> to vector<1x288xf32>
    %25 = vector.broadcast %23 : vector<24x1xf32> to vector<24x288xf32>
    %26 = vector.broadcast %24 : vector<1x288xf32> to vector<24x288xf32>
    %27 = arith.mulf %25, %26 : vector<24x288xf32>
    %28 = arith.addf %22, %27 : vector<24x288xf32>
    %29 = vector.extract_strided_slice %2 {offsets = [0, 5], sizes = [24, 1], strides = [1, 1]} : vector<24x8xf32> to vector<24x1xf32>
    %30 = vector.broadcast %29 : vector<24x1xf32> to vector<24x288xf32>
    %31 = arith.addf %28, %30 : vector<24x288xf32>
    %cst = arith.constant 0.000000e+00 : f32
    %cst_7 = arith.constant 6.000000e+00 : f32
    %32 = vector.broadcast %cst : f32 to vector<24x288xf32>
    %33 = arith.maximumf %32, %31 : vector<24x288xf32>
    %34 = vector.broadcast %cst_7 : f32 to vector<24x288xf32>
    %35 = arith.minimumf %34, %33 : vector<24x288xf32>
    %36 = vector.extract_strided_slice %35 {offsets = [0, 16], sizes = [24, 256], strides = [1, 1]} : vector<24x288xf32> to vector<24x256xf32>
    %37 = vector.extract_strided_slice %35 {offsets = [0, 15], sizes = [24, 256], strides = [1, 1]} : vector<24x288xf32> to vector<24x256xf32>
    %38 = vector.extract_strided_slice %35 {offsets = [0, 17], sizes = [24, 256], strides = [1, 1]} : vector<24x288xf32> to vector<24x256xf32>
    %39 = vector.extract_strided_slice %35 {offsets = [0, 0], sizes = [24, 256], strides = [1, 1]} : vector<24x288xf32> to vector<24x256xf32>
    %40 = vector.extract_strided_slice %35 {offsets = [0, 32], sizes = [24, 256], strides = [1, 1]} : vector<24x288xf32> to vector<24x256xf32>
    %c0_8 = arith.constant 0 : index
    %c0_9 = arith.constant 0 : index
    %41 = vector.load %arg3[%c0_8, %c0_9] : memref<4x256xf32, #tpu.memory_space<vmem>>, vector<1x256xf32>
    %c1 = arith.constant 1 : index
    %c0_10 = arith.constant 0 : index
    %42 = vector.load %arg3[%c1, %c0_10] : memref<4x256xf32, #tpu.memory_space<vmem>>, vector<1x256xf32>
    %c2 = arith.constant 2 : index
    %c0_11 = arith.constant 0 : index
    %43 = vector.load %arg3[%c2, %c0_11] : memref<4x256xf32, #tpu.memory_space<vmem>>, vector<1x256xf32>
    %c3 = arith.constant 3 : index
    %c0_12 = arith.constant 0 : index
    %44 = vector.load %arg3[%c3, %c0_12] : memref<4x256xf32, #tpu.memory_space<vmem>>, vector<1x256xf32>
    %45 = vector.extract_strided_slice %2 {offsets = [0, 1], sizes = [24, 1], strides = [1, 1]} : vector<24x8xf32> to vector<24x1xf32>
    %46 = vector.broadcast %45 : vector<24x1xf32> to vector<24x256xf32>
    %47 = arith.mulf %36, %46 : vector<24x256xf32>
    %48 = vector.broadcast %41 : vector<1x256xf32> to vector<24x256xf32>
    %49 = arith.mulf %37, %48 : vector<24x256xf32>
    %50 = vector.extract_strided_slice %2 {offsets = [0, 0], sizes = [24, 1], strides = [1, 1]} : vector<24x8xf32> to vector<24x1xf32>
    %51 = vector.broadcast %50 : vector<24x1xf32> to vector<24x256xf32>
    %52 = arith.mulf %49, %51 : vector<24x256xf32>
    %53 = arith.addf %47, %52 : vector<24x256xf32>
    %54 = vector.broadcast %42 : vector<1x256xf32> to vector<24x256xf32>
    %55 = arith.mulf %38, %54 : vector<24x256xf32>
    %56 = vector.extract_strided_slice %2 {offsets = [0, 2], sizes = [24, 1], strides = [1, 1]} : vector<24x8xf32> to vector<24x1xf32>
    %57 = vector.broadcast %56 : vector<24x1xf32> to vector<24x256xf32>
    %58 = arith.mulf %55, %57 : vector<24x256xf32>
    %59 = arith.addf %53, %58 : vector<24x256xf32>
    %60 = vector.broadcast %43 : vector<1x256xf32> to vector<24x256xf32>
    %61 = arith.mulf %39, %60 : vector<24x256xf32>
    %62 = vector.extract_strided_slice %2 {offsets = [0, 3], sizes = [24, 1], strides = [1, 1]} : vector<24x8xf32> to vector<24x1xf32>
    %63 = vector.broadcast %62 : vector<24x1xf32> to vector<24x256xf32>
    %64 = arith.mulf %61, %63 : vector<24x256xf32>
    %65 = arith.addf %59, %64 : vector<24x256xf32>
    %66 = vector.broadcast %44 : vector<1x256xf32> to vector<24x256xf32>
    %67 = arith.mulf %40, %66 : vector<24x256xf32>
    %68 = vector.extract_strided_slice %2 {offsets = [0, 4], sizes = [24, 1], strides = [1, 1]} : vector<24x8xf32> to vector<24x1xf32>
    %69 = vector.broadcast %68 : vector<24x1xf32> to vector<24x256xf32>
    %70 = arith.mulf %67, %69 : vector<24x256xf32>
    %71 = arith.addf %65, %70 : vector<24x256xf32>
    %72 = vector.extract_strided_slice %2 {offsets = [0, 6], sizes = [24, 1], strides = [1, 1]} : vector<24x8xf32> to vector<24x1xf32>
    %73 = vector.broadcast %72 : vector<24x1xf32> to vector<24x256xf32>
    %74 = arith.addf %71, %73 : vector<24x256xf32>
    %cst_13 = arith.constant 0.000000e+00 : f32
    %cst_14 = arith.constant 6.000000e+00 : f32
    %75 = vector.broadcast %cst_13 : f32 to vector<24x256xf32>
    %76 = arith.maximumf %75, %74 : vector<24x256xf32>
    %77 = vector.broadcast %cst_14 : f32 to vector<24x256xf32>
    %78 = arith.minimumf %77, %76 : vector<24x256xf32>
    %c0_15 = arith.constant 0 : index
    %c0_16 = arith.constant 0 : index
    %79 = vector.load %arg6[%c0_15, %c0_16] : memref<4x24xbf16, #tpu.memory_space<vmem>>, vector<4x24xbf16>
    %80 = arith.truncf %78 : vector<24x256xf32> to vector<24x256xbf16>
    %cst_17 = arith.constant dense<0.000000e+00> : vector<4x256xf32>
    %81 = tpu.matmul %79, %80, %cst_17 {dimension_numbers = #tpu.dot_dimension_numbers<[1], [0], [0], [1], [0, 0, 1, 1], [], []>} : vector<4x24xbf16>, vector<24x256xbf16>, vector<4x256xf32> -> vector<4x256xf32>
    %c0_18 = arith.constant 0 : index
    %c0_19 = arith.constant 0 : index
    %82 = vector.load %arg7[%c0_18, %c0_19] : memref<4x1xf32, #tpu.memory_space<vmem>>, vector<4x1xf32>
    %83 = vector.broadcast %82 : vector<4x1xf32> to vector<4x256xf32>
    %84 = arith.addf %81, %83 : vector<4x256xf32>
    %85 = vector.extract_strided_slice %1 {offsets = [0, 16], sizes = [4, 256], strides = [1, 1]} : vector<4x288xbf16> to vector<4x256xbf16>
    %86 = arith.extf %85 : vector<4x256xbf16> to vector<4x256xf32>
    %87 = arith.addf %84, %86 : vector<4x256xf32>
    %c0_20 = arith.constant 0 : index
    %c0_21 = arith.constant 0 : index
    %c0_22 = arith.constant 0 : index
    %88 = vector.load %arg8[%c0_20, %c0_21, %c0_22] : memref<1x4x256xf32, #tpu.memory_space<vmem>>, vector<1x4x256xf32>
    %89 = vector.shape_cast %88 : vector<1x4x256xf32> to vector<4x256xf32>
    %90 = vector.shape_cast %87 : vector<4x256xf32> to vector<1x4x256xf32>
    tpu.vector_store %arg8[%c0_20, %c0_21, %c0_22], %90 {strides = array<i32>} : memref<1x4x256xf32, #tpu.memory_space<vmem>>, vector<1x4x256xf32>,
    return
  }
  func.func @transform_0(%arg0: i32, %arg1: i32) -> (i32, i32, i32, i32) {
    %c0_i32 = arith.constant 0 : i32
    %c0_i32_0 = arith.constant 0 : i32
    %c0_i32_1 = arith.constant 0 : i32
    return %arg0, %arg1, %c0_i32, %c0_i32_0 : i32, i32, i32, i32
  }
  func.func @transform_1(%arg0: i32, %arg1: i32) -> (i32, i32) {
    %c0_i32 = arith.constant 0 : i32
    %c0_i32_0 = arith.constant 0 : i32
    return %c0_i32, %arg1 : i32, i32
  }
  func.func @transform_2(%arg0: i32, %arg1: i32) -> (i32, i32) {
    %c0_i32 = arith.constant 0 : i32
    %c0_i32_0 = arith.constant 0 : i32
    %c0_i32_1 = arith.constant 0 : i32
    return %c0_i32, %c0_i32_0 : i32, i32
  }
  func.func @transform_3(%arg0: i32, %arg1: i32) -> (i32, i32) {
    %c0_i32 = arith.constant 0 : i32
    %c0_i32_0 = arith.constant 0 : i32
    %c0_i32_1 = arith.constant 0 : i32
    return %c0_i32, %c0_i32_0 : i32, i32
  }
  func.func @transform_4(%arg0: i32, %arg1: i32) -> (i32, i32) {
    %c0_i32 = arith.constant 0 : i32
    %c0_i32_0 = arith.constant 0 : i32
    %c0_i32_1 = arith.constant 0 : i32
    return %c0_i32, %c0_i32_0 : i32, i32
  }
  func.func @transform_5(%arg0: i32, %arg1: i32) -> (i32, i32) {
    %c0_i32 = arith.constant 0 : i32
    %c0_i32_0 = arith.constant 0 : i32
    %c0_i32_1 = arith.constant 0 : i32
    return %c0_i32, %c0_i32_0 : i32, i32
  }
  func.func @transform_6(%arg0: i32, %arg1: i32) -> (i32, i32, i32) {
    %c0_i32 = arith.constant 0 : i32
    %c0_i32_0 = arith.constant 0 : i32
    return %arg0, %c0_i32, %arg1 : i32, i32, i32
  }
}

</mosaic_0001>

<llo_original>
// kernel: tpu_custom_call.1
$region0: #{tpu_custom_call.1}
  #allocation0 [shape = 'u32[]', space=smem, size = 0x4, offset = 0x4, fixed_abs, tag = 'smem constant byte address 0x4 - core index']
  #allocation1 [shape = 'u32[144,128]{1,0:T(1,128)}', space=vmem, size = 0x12000, scoped, tag = 'internal scratch']
  %s0 = inlined_call_operand.vmem [shape: bf16[2,1,4,288], index: 0, kind: input, shape index: {}]
  %s1 = inlined_call_operand.vmem [shape: f32[4,256], index: 1, kind: input, shape index: {}]
  %s2 = inlined_call_operand.vmem [shape: bf16[24,4], index: 2, kind: input, shape index: {}]
  %s3 = inlined_call_operand.vmem [shape: f32[24,8], index: 3, kind: input, shape index: {}]
  %s4 = inlined_call_operand.vmem [shape: bf16[4,24], index: 4, kind: input, shape index: {}]
  %s5 = inlined_call_operand.vmem [shape: f32[4,1], index: 5, kind: input, shape index: {}]
  %s6 = inlined_call_operand.hbm [shape: f32[2,4,256], index: 6, kind: output, shape index: {}]
  %s7 = sld [smem:[#allocation0]]
  $region57: #{tpu_custom_call.1} parent=0
    _
  %s9 = ssub.s32 1, %s7
  %s10 = scalar_select 0, %s9, %s7
  $region1: #{tpu_custom_call.1} parent=0
    #allocation2 [shape = 'u8[8192]{0}', space=vmem, size = 0x2000, scoped, tag = 'output window, operand 0']
    #allocation3 [shape = 's32[2]{0}', space=sflag, size = 0x8, scoped, tag = 'scoped memory for tpu_custom_call.1']
    %11 = vsyncpa [#allocation3], 0
    %s12 = scalar_lea.sflag [#allocation3], 1
    %13 = vsyncpa %s12, 0
    loop: start=0, step=1, limit=4
    $region2: #{tpu_custom_call.1} parent=1 // loop_pre_header
      _
    $region3: #{tpu_custom_call.1} parent=1 // loop_header
      %s15 = sphi 0, %s19
      %p16 = scmp.ge.s32.totalorder %s15, 4
      %s22 = sphi 0, %s34
      %s23 = sphi 0, %s30
      %s24 = sphi 0, %s22
      %s25 = sphi 0, %s23
      %s26 = sphi 0, %s24
      %s27 = sphi 0, %s25
      %s39 = sphi 0, %s41
      %s42 = sphi 0, %s39
      %s43 = sphi 0, %s42
      %s59 = sphi 0, %s43
      %s65 = sphi 0, %s67
      %s68 = sphi 0, %s65
      %s69 = sphi 0, %s68
      %s85 = sphi 0, %s69
      %s89 = sphi 0, %s89
      %s91 = sphi 0, %s89
      %s92 = sphi 0, %s91
      %s106 = sphi 0, %s92
      %s110 = sphi 0, %s110
      %s112 = sphi 0, %s110
      %s113 = sphi 0, %s112
      %s127 = sphi 0, %s113
      %s131 = sphi 0, %s131
      %s133 = sphi 0, %s131
      %s134 = sphi 0, %s133
      %s148 = sphi 0, %s134
      %s152 = sphi 0, %s152
      %s154 = sphi 0, %s152
      %s155 = sphi 0, %s154
      %s169 = sphi 0, %s155
      %s177 = sphi 0, %s179
      %s180 = sphi 0, %s177
      %s181 = sphi 0, %s180
      %s197 = sphi 0, %s181
    $region4: #{tpu_custom_call.1} parent=1 // loop_header_branch
      %18 = sbr.rel (%p16) target = $region8
    $region5: #{tpu_custom_call.1} parent=1 // loop_body
      %s20 = ssub.s32 %s15, 1
      %s21 = ssub.s32 %s15, 2
      %s28 = sadd.s32 1, %s23
      %p29 = scmp.ge.s32.totalorder %s28, 1
      %s30 = scalar_select %p29, 0, %s28
      %s31 = sadd.s32 1, %s22
      %s32 = scalar_select %p29, %s31, %s22
      %p33 = scmp.ge.s32.totalorder %s32, 2
      %s34 = scalar_select %p33, 0, %s32
      %s35 = ssub.s32 %s22, %s34
      %s36 = ssub.s32 %s23, %s30
      %s37 = sor.u32 %s35, %s36
      %p38 = scmp.eq.s32.totalorder %s37, 0
      %s40 = sadd.s32 %s39, 1
      %s41 = scalar_select %p38, %s39, %s40
      %p44 = pneg %p38
      %p45 = scmp.eq.s32.totalorder %s15, 1
      %p46 = por %p44, %p45
      %p47 = scmp.ne.s32.totalorder %s39, %s42
      %p48 = scmp.eq.s32.totalorder %s15, 0
      %p49 = por %p47, %p48
      %p50 = scmp.ne.s32.totalorder %s39, %s42
      %p51 = scmp.eq.s32.totalorder %s20, 1
      %p52 = por %p50, %p51
      %p53 = scmp.ne.s32.totalorder %s42, %s43
      %p54 = scmp.eq.s32.totalorder %s20, 0
      %p55 = por %p53, %p54
      %p56 = scmp.ne.s32.totalorder %s42, %s43
      %p57 = scmp.eq.s32.totalorder %s21, 1
      %p58 = por %p56, %p57
      %p60 = scmp.ne.s32.totalorder %s43, %s59
      %p61 = scmp.eq.s32.totalorder %s21, 0
      %p62 = por %p60, %p61
      %s63 = ssub.s32 %s23, %s30
      %p64 = scmp.eq.s32.totalorder %s63, 0
      %s66 = sadd.s32 %s65, 1
      %s67 = scalar_select %p64, %s65, %s66
      %p70 = pneg %p64
      %p71 = scmp.eq.s32.totalorder %s15, 1
      %p72 = por %p70, %p71
      %p73 = scmp.ne.s32.totalorder %s65, %s68
      %p74 = scmp.eq.s32.totalorder %s15, 0
      %p75 = por %p73, %p74
      %p76 = scmp.ne.s32.totalorder %s65, %s68
      %p77 = scmp.eq.s32.totalorder %s20, 1
      %p78 = por %p76, %p77
      %p79 = scmp.ne.s32.totalorder %s68, %s69
      %p80 = scmp.eq.s32.totalorder %s20, 0
      %p81 = por %p79, %p80
      %p82 = scmp.ne.s32.totalorder %s68, %s69
      %p83 = scmp.eq.s32.totalorder %s21, 1
      %p84 = por %p82, %p83
      %p86 = scmp.ne.s32.totalorder %s69, %s85
      %p87 = scmp.eq.s32.totalorder %s21, 0
      %p88 = por %p86, %p87
      %s90 = sadd.s32 %s89, 1
      %p93 = scmp.eq.s32.totalorder %s15, 1
      %p94 = scmp.ne.s32.totalorder %s89, %s91
      %p95 = scmp.eq.s32.totalorder %s15, 0
      %p96 = por %p94, %p95
      %p97 = scmp.ne.s32.totalorder %s89, %s91
      %p98 = scmp.eq.s32.totalorder %s20, 1
      %p99 = por %p97, %p98
      %p100 = scmp.ne.s32.totalorder %s91, %s92
      %p101 = scmp.eq.s32.totalorder %s20, 0
      %p102 = por %p100, %p101
      %p103 = scmp.ne.s32.totalorder %s91, %s92
      %p104 = scmp.eq.s32.totalorder %s21, 1
      %p105 = por %p103, %p104
      %p107 = scmp.ne.s32.totalorder %s92, %s106
      %p108 = scmp.eq.s32.totalorder %s21, 0
      %p109 = por %p107, %p108
      %s111 = sadd.s32 %s110, 1
      %p114 = scmp.eq.s32.totalorder %s15, 1
      %p115 = scmp.ne.s32.totalorder %s110, %s112
      %p116 = scmp.eq.s32.totalorder %s15, 0
      %p117 = por %p115, %p116
      %p118 = scmp.ne.s32.totalorder %s110, %s112
      %p119 = scmp.eq.s32.totalorder %s20, 1
      %p120 = por %p118, %p119
      %p121 = scmp.ne.s32.totalorder %s112, %s113
      %p122 = scmp.eq.s32.totalorder %s20, 0
      %p123 = por %p121, %p122
      %p124 = scmp.ne.s32.totalorder %s112, %s113
      %p125 = scmp.eq.s32.totalorder %s21, 1
      %p126 = por %p124, %p125
      %p128 = scmp.ne.s32.totalorder %s113, %s127
      %p129 = scmp.eq.s32.totalorder %s21, 0
      %p130 = por %p128, %p129
      %s132 = sadd.s32 %s131, 1
      %p135 = scmp.eq.s32.totalorder %s15, 1
      %p136 = scmp.ne.s32.totalorder %s131, %s133
      %p137 = scmp.eq.s32.totalorder %s15, 0
      %p138 = por %p136, %p137
      %p139 = scmp.ne.s32.totalorder %s131, %s133
      %p140 = scmp.eq.s32.totalorder %s20, 1
      %p141 = por %p139, %p140
      %p142 = scmp.ne.s32.totalorder %s133, %s134
      %p143 = scmp.eq.s32.totalorder %s20, 0
      %p144 = por %p142, %p143
      %p145 = scmp.ne.s32.totalorder %s133, %s134
      %p146 = scmp.eq.s32.totalorder %s21, 1
      %p147 = por %p145, %p146
      %p149 = scmp.ne.s32.totalorder %s134, %s148
      %p150 = scmp.eq.s32.totalorder %s21, 0
      %p151 = por %p149, %p150
      %s153 = sadd.s32 %s152, 1
      %p156 = scmp.eq.s32.totalorder %s15, 1
      %p157 = scmp.ne.s32.totalorder %s152, %s154
      %p158 = scmp.eq.s32.totalorder %s15, 0
      %p159 = por %p157, %p158
      %p160 = scmp.ne.s32.totalorder %s152, %s154
      %p161 = scmp.eq.s32.totalorder %s20, 1
      %p162 = por %p160, %p161
      %p163 = scmp.ne.s32.totalorder %s154, %s155
      %p164 = scmp.eq.s32.totalorder %s20, 0
      %p165 = por %p163, %p164
      %p166 = scmp.ne.s32.totalorder %s154, %s155
      %p167 = scmp.eq.s32.totalorder %s21, 1
      %p168 = por %p166, %p167
      %p170 = scmp.ne.s32.totalorder %s155, %s169
      %p171 = scmp.eq.s32.totalorder %s21, 0
      %p172 = por %p170, %p171
      %s173 = ssub.s32 %s22, %s34
      %s174 = ssub.s32 %s23, %s30
      %s175 = sor.u32 %s173, %s174
      %p176 = scmp.eq.s32.totalorder %s175, 0
      %s178 = sadd.s32 %s177, 1
      %s179 = scalar_select %p176, %s177, %s178
      %p182 = pneg %p176
      %p183 = scmp.eq.s32.totalorder %s15, 1
      %p184 = por %p182, %p183
      %p185 = scmp.ne.s32.totalorder %s177, %s180
      %p186 = scmp.eq.s32.totalorder %s15, 0
      %p187 = por %p185, %p186
      %p188 = scmp.ne.s32.totalorder %s177, %s180
      %p189 = scmp.eq.s32.totalorder %s20, 1
      %p190 = por %p188, %p189
      %p191 = scmp.ne.s32.totalorder %s180, %s181
      %p192 = scmp.eq.s32.totalorder %s20, 0
      %p193 = por %p191, %p192
      %p194 = scmp.ne.s32.totalorder %s180, %s181
      %p195 = scmp.eq.s32.totalorder %s21, 1
      %p196 = por %p194, %p195
      %p198 = scmp.ne.s32.totalorder %s181, %s197
      %p199 = scmp.eq.s32.totalorder %s21, 0
      %p200 = por %p198, %p199
      %p201 = scmp.le.s32.totalorder 1, %s15
      %p202 = scmp.lt.s32.totalorder %s15, 3
      %p203 = pnand %p201, %p202
      %p204 = pneg %p203
      // Predicated region
      $region9: #{tpu_custom_call.1} parent=5 // pred_check
        _
      $region10: #{tpu_custom_call.1} parent=5 // pred_check_branch
        %206 = sbr.rel (%p203) target = $region12
      $region11: #{tpu_custom_call.1} parent=5 // pred_region
        %s207 = ssub.s32 %s15, 1
        // Predicated region
        $region13: #{tpu_custom_call.1} parent=11 // pred_check
          %p208 = pneg %p81
        $region14: #{tpu_custom_call.1} parent=11 // pred_check_branch
          %210 = sbr.rel (%p208) target = $region16
        $region15: #{tpu_custom_call.1} parent=11 // pred_region
          %s211 = smul.u32 2, %s25
          %p212 = scmp.lt.s32.totalorder %s211, 1
          %s213 = scalar_select %p212, %s211, 1
          %s214 = smul.addr %s213, 4
          %s215 = scalar_lea.vmem %s1, %s214
          %s216 = smul.u32 2, %s25
        $region16: #{tpu_custom_call.1} parent=11 // pred_fallthru
          _
        // Predicated region
        $region17: #{tpu_custom_call.1} parent=11 // pred_check
          %p217 = pneg %p102
        $region18: #{tpu_custom_call.1} parent=11 // pred_check_branch
          %219 = sbr.rel (%p217) target = $region20
        $region19: #{tpu_custom_call.1} parent=11 // pred_region
          _
        $region20: #{tpu_custom_call.1} parent=11 // pred_fallthru
          _
        // Predicated region
        $region21: #{tpu_custom_call.1} parent=11 // pred_check
          %p220 = pneg %p123
        $region22: #{tpu_custom_call.1} parent=11 // pred_check_branch
          %222 = sbr.rel (%p220) target = $region24
        $region23: #{tpu_custom_call.1} parent=11 // pred_region
          _
        $region24: #{tpu_custom_call.1} parent=11 // pred_fallthru
          _
        // Predicated region
        $region25: #{tpu_custom_call.1} parent=11 // pred_check
          %p223 = pneg %p144
        $region26: #{tpu_custom_call.1} parent=11 // pred_check_branch
          %225 = sbr.rel (%p223) target = $region28
        $region27: #{tpu_custom_call.1} parent=11 // pred_region
          _
        $region28: #{tpu_custom_call.1} parent=11 // pred_fallthru
          _
        // Predicated region
        $region29: #{tpu_custom_call.1} parent=11 // pred_check
          %p226 = pneg %p165
        $region30: #{tpu_custom_call.1} parent=11 // pred_check_branch
          %228 = sbr.rel (%p226) target = $region32
        $region31: #{tpu_custom_call.1} parent=11 // pred_region
          _
        $region32: #{tpu_custom_call.1} parent=11 // pred_fallthru
          _
      $region12: #{tpu_custom_call.1} parent=5 // pred_fallthru
        _
      %p229 = scmp.lt.s32.totalorder %s15, 2
      // Predicated region
      $region33: #{tpu_custom_call.1} parent=5 // pred_check
        %p230 = pneg %p229
      $region34: #{tpu_custom_call.1} parent=5 // pred_check_branch
        %232 = sbr.rel (%p230) target = $region36
      $region35: #{tpu_custom_call.1} parent=5 // pred_region
        // Predicated region
        $region37: #{tpu_custom_call.1} parent=35 // pred_check
          %p233 = pneg %p49
        $region38: #{tpu_custom_call.1} parent=35 // pred_check_branch
          %235 = sbr.rel (%p233) target = $region40
        $region39: #{tpu_custom_call.1} parent=35 // pred_region
          %p236 = scmp.lt.s32.totalorder %s22, 1
          %s237 = scalar_select %p236, %s22, 1
          %p238 = scmp.lt.s32.totalorder %s23, 0
          %s239 = scalar_select %p238, %s23, 0
          %s240 = smul.addr %s239, 3
          %s241 = smul.addr %s237, 3
          %s242 = sadd.s32 %s240, %s241
          %s243 = smul.addr %s242, 2
          %s244 = scalar_lea.vmem %s0, %s243
        $region40: #{tpu_custom_call.1} parent=35 // pred_fallthru
          _
      $region36: #{tpu_custom_call.1} parent=5 // pred_fallthru
        _
      %p245 = scmp.le.s32.totalorder 1, %s15
      %p246 = scmp.lt.s32.totalorder %s15, 3
      %p247 = pnand %p245, %p246
      %p248 = pneg %p247
      // Predicated region
      $region41: #{tpu_custom_call.1} parent=5 // pred_check
        _
      $region42: #{tpu_custom_call.1} parent=5 // pred_check_branch
        %250 = sbr.rel (%p247) target = $region44
      $region43: #{tpu_custom_call.1} parent=5 // pred_region
        %s251 = ssub.s32 %s15, 1
        %p252 = scmp.lt.s32.totalorder %s24, 1
        %s253 = scalar_select %p252, %s24, 1
        %p254 = scmp.lt.s32.totalorder %s25, 0
        %s255 = scalar_select %p254, %s25, 0
        %s256 = smul.addr %s255, 3
        %s257 = smul.addr %s253, 3
        %s258 = sadd.s32 %s256, %s257
        %s259 = smul.addr %s258, 2
        %s260 = scalar_lea.vmem %s0, %s259
        %p261 = pneg %p55
        %p262 = pneg %p52
        %s263 = smul.u32 2, %s25
        %p264 = scmp.lt.s32.totalorder %s263, 1
        %s265 = scalar_select %p264, %s263, 1
        %s266 = smul.addr %s265, 4
        %s267 = scalar_lea.vmem %s1, %s266
        %p268 = pneg %p81
        %p269 = pneg %p78
        %p270 = pneg %p102
        %p271 = pneg %p99
        %p272 = pneg %p123
        %p273 = pneg %p120
        %p274 = pneg %p144
        %p275 = pneg %p141
        %p276 = pneg %p165
        %p277 = pneg %p162
        %p278 = pneg %p193
        %p279 = pneg %p190
        %s280 = sand.u32 %s180, 1
        %s281 = scalar_lea.sflag [#allocation3], %s280
        %s282 = sand.u32 %s180, 1
        %s283 = smul.addr %s282, 8
        %s284 = scalar_lea.vmem [#allocation2], %s283
        %p285 = scmp.lt.s32.totalorder %s24, 1
        %s286 = scalar_select %p285, %s24, 1
        %p287 = scmp.lt.s32.totalorder %s25, 0
        %s288 = scalar_select %p287, %s25, 0
        %s289 = smul.addr %s288, 3
        %s290 = smul.addr %s286, 3
        %s291 = sadd.s32 %s289, %s290
        %s292 = smul.addr %s291, 2
        %s293 = scalar_lea.vmem %s0, %s292
        %s294 = smul.u32 2, %s25
        %p295 = scmp.lt.s32.totalorder %s294, 1
        %s296 = scalar_select %p295, %s294, 1
        %s297 = smul.addr %s296, 4
        %s298 = scalar_lea.vmem %s1, %s297
        %s299 = smul.u32 2, %s25
        %s300 = smul.u32 2, %s25
        %v302 = vld [vmem:[%s293] sm:$0x3f]
        %v303 = vld [vmem:[%s3] sm:$0xff]
        %v304 = vld [vmem:[%s3 + $0x8] sm:$0xff]
        %v305 = vld [vmem:[%s3 + $0x10] sm:$0xff]
        %v306 = vld [vmem:[%s2] sm:$0xf]
        %v307 = vld [vmem:[%s2 + $0x4] sm:$0xf]
        %v308 = vld [vmem:[%s2 + $0x8] sm:$0xf]
        %v309 = vunpack.c.l.bf16 %v306
        %v310 = vunpack.c.l.bf16 %v307
        %v311 = vunpack.c.l.bf16 %v308
        %v312 = vunpack.c.l.bf16 %v302
        %v313 = vunpack.c.h.bf16 %v302
        %315 = vset.pattern.permute.xlu0 0
        %316 = vperm.xlu0 %315, %v309
        %v317 = vpop.permute.xlu0 %316
        %320 = vset.pattern.permute.xlu0 0
        %321 = vperm.xlu0 %320, %v310
        %v322 = vpop.permute.xlu0 %321
        %325 = vset.pattern.permute.xlu0 0
        %326 = vperm.xlu0 %325, %v311
        %v327 = vpop.permute.xlu0 %326
        %v331 = vlaneseq
        %v332 = vshrl.u32 %v331, 7
        %v333 = vsub.s32 0, %v332
        %v334 = vrot.slane %v312, %v333
        %v335 = vlaneseq
        %v336 = vshrl.u32 %v335, 7
        %v337 = vsub.s32 4, %v336
        %v338 = vrot.slane %v312, %v337
        %v339 = vlaneseq
        %v340 = vshrl.u32 %v339, 7
        %v341 = vsub.s32 0, %v340
        %v342 = vrot.slane %v313, %v341
        %v346 = vlaneseq
        %v347 = vshrl.u32 %v346, 7
        %v348 = vsub.s32 0, %v347
        %v349 = vrot.slane %v334, %v348
        %v350 = vlaneseq
        %v351 = vshrl.u32 %v350, 7
        %v352 = vsub.s32 0, %v351
        %v353 = vrot.slane %v338, %v352
        %v354 = vlaneseq
        %v355 = vshrl.u32 %v354, 7
        %v356 = vsub.s32 0, %v355
        %v357 = vrot.slane %v342, %v356
        %v358 = vmul.f32 %v317, %v349
        %v359 = vmul.f32 %v317, %v353
        %v360 = vmul.f32 %v317, %v357
        %v361 = vmul.f32 %v322, %v349
        %v362 = vmul.f32 %v322, %v353
        %v363 = vmul.f32 %v322, %v357
        %v364 = vmul.f32 %v327, %v349
        %v365 = vmul.f32 %v327, %v353
        %v366 = vmul.f32 %v327, %v357
        %367 = vset.pattern.permute.xlu0 1
        %368 = vperm.xlu0 %367, %v309
        %v369 = vpop.permute.xlu0 %368
        %371 = vset.pattern.permute.xlu0 1
        %372 = vperm.xlu0 %371, %v310
        %v373 = vpop.permute.xlu0 %372
        %375 = vset.pattern.permute.xlu0 1
        %376 = vperm.xlu0 %375, %v311
        %v377 = vpop.permute.xlu0 %376
        %v379 = vlaneseq
        %v380 = vshrl.u32 %v379, 7
        %v381 = vsub.s32 1, %v380
        %v382 = vrot.slane %v312, %v381
        %v383 = vlaneseq
        %v384 = vshrl.u32 %v383, 7
        %v385 = vsub.s32 5, %v384
        %v386 = vrot.slane %v312, %v385
        %v387 = vlaneseq
        %v388 = vshrl.u32 %v387, 7
        %v389 = vsub.s32 1, %v388
        %v390 = vrot.slane %v313, %v389
        %v394 = vlaneseq
        %v395 = vshrl.u32 %v394, 7
        %v396 = vsub.s32 1, %v395
        %v397 = vrot.slane %v382, %v396
        %v398 = vlaneseq
        %v399 = vshrl.u32 %v398, 7
        %v400 = vsub.s32 1, %v399
        %v401 = vrot.slane %v386, %v400
        %v402 = vlaneseq
        %v403 = vshrl.u32 %v402, 7
        %v404 = vsub.s32 1, %v403
        %v405 = vrot.slane %v390, %v404
        %v406 = vmul.f32 %v369, %v397
        %v407 = vmul.f32 %v369, %v401
        %v408 = vmul.f32 %v369, %v405
        %v409 = vmul.f32 %v373, %v397
        %v410 = vmul.f32 %v373, %v401
        %v411 = vmul.f32 %v373, %v405
        %v412 = vmul.f32 %v377, %v397
        %v413 = vmul.f32 %v377, %v401
        %v414 = vmul.f32 %v377, %v405
        %v415 = vadd.f32 %v358, %v406
        %v416 = vadd.f32 %v359, %v407
        %v417 = vadd.f32 %v360, %v408
        %v418 = vadd.f32 %v361, %v409
        %v419 = vadd.f32 %v362, %v410
        %v420 = vadd.f32 %v363, %v411
        %v421 = vadd.f32 %v364, %v412
        %v422 = vadd.f32 %v365, %v413
        %v423 = vadd.f32 %v366, %v414
        %424 = vset.pattern.permute.xlu0 2
        %425 = vperm.xlu0 %424, %v309
        %v426 = vpop.permute.xlu0 %425
        %428 = vset.pattern.permute.xlu0 2
        %429 = vperm.xlu0 %428, %v310
        %v430 = vpop.permute.xlu0 %429
        %432 = vset.pattern.permute.xlu0 2
        %433 = vperm.xlu0 %432, %v311
        %v434 = vpop.permute.xlu0 %433
        %v436 = vlaneseq
        %v437 = vshrl.u32 %v436, 7
        %v438 = vsub.s32 2, %v437
        %v439 = vrot.slane %v312, %v438
        %v440 = vlaneseq
        %v441 = vshrl.u32 %v440, 7
        %v442 = vsub.s32 6, %v441
        %v443 = vrot.slane %v312, %v442
        %v444 = vlaneseq
        %v445 = vshrl.u32 %v444, 7
        %v446 = vsub.s32 2, %v445
        %v447 = vrot.slane %v313, %v446
        %v451 = vlaneseq
        %v452 = vshrl.u32 %v451, 7
        %v453 = vsub.s32 2, %v452
        %v454 = vrot.slane %v439, %v453
        %v455 = vlaneseq
        %v456 = vshrl.u32 %v455, 7
        %v457 = vsub.s32 2, %v456
        %v458 = vrot.slane %v443, %v457
        %v459 = vlaneseq
        %v460 = vshrl.u32 %v459, 7
        %v461 = vsub.s32 2, %v460
        %v462 = vrot.slane %v447, %v461
        %v463 = vmul.f32 %v426, %v454
        %v464 = vmul.f32 %v426, %v458
        %v465 = vmul.f32 %v426, %v462
        %v466 = vmul.f32 %v430, %v454
        %v467 = vmul.f32 %v430, %v458
        %v468 = vmul.f32 %v430, %v462
        %v469 = vmul.f32 %v434, %v454
        %v470 = vmul.f32 %v434, %v458
        %v471 = vmul.f32 %v434, %v462
        %v472 = vadd.f32 %v415, %v463
        %v473 = vadd.f32 %v416, %v464
        %v474 = vadd.f32 %v417, %v465
        %v475 = vadd.f32 %v418, %v466
        %v476 = vadd.f32 %v419, %v467
        %v477 = vadd.f32 %v420, %v468
        %v478 = vadd.f32 %v421, %v469
        %v479 = vadd.f32 %v422, %v470
        %v480 = vadd.f32 %v423, %v471
        %481 = vset.pattern.permute.xlu0 3
        %482 = vperm.xlu0 %481, %v309
        %v483 = vpop.permute.xlu0 %482
        %485 = vset.pattern.permute.xlu0 3
        %486 = vperm.xlu0 %485, %v310
        %v487 = vpop.permute.xlu0 %486
        %489 = vset.pattern.permute.xlu0 3
        %490 = vperm.xlu0 %489, %v311
        %v491 = vpop.permute.xlu0 %490
        %v493 = vlaneseq
        %v494 = vshrl.u32 %v493, 7
        %v495 = vsub.s32 3, %v494
        %v496 = vrot.slane %v312, %v495
        %v497 = vlaneseq
        %v498 = vshrl.u32 %v497, 7
        %v499 = vsub.s32 7, %v498
        %v500 = vrot.slane %v312, %v499
        %v501 = vlaneseq
        %v502 = vshrl.u32 %v501, 7
        %v503 = vsub.s32 3, %v502
        %v504 = vrot.slane %v313, %v503
        %v508 = vlaneseq
        %v509 = vshrl.u32 %v508, 7
        %v510 = vsub.s32 3, %v509
        %v511 = vrot.slane %v496, %v510
        %v512 = vlaneseq
        %v513 = vshrl.u32 %v512, 7
        %v514 = vsub.s32 3, %v513
        %v515 = vrot.slane %v500, %v514
        %v516 = vlaneseq
        %v517 = vshrl.u32 %v516, 7
        %v518 = vsub.s32 3, %v517
        %v519 = vrot.slane %v504, %v518
        %v520 = vmul.f32 %v483, %v511
        %v521 = vmul.f32 %v483, %v515
        %v522 = vmul.f32 %v483, %v519
        %v523 = vmul.f32 %v487, %v511
        %v524 = vmul.f32 %v487, %v515
        %v525 = vmul.f32 %v487, %v519
        %v526 = vmul.f32 %v491, %v511
        %v527 = vmul.f32 %v491, %v515
        %v528 = vmul.f32 %v491, %v519
        %v529 = vadd.f32 %v472, %v520
        %v530 = vadd.f32 %v473, %v521
        %v531 = vadd.f32 %v474, %v522
        %v532 = vadd.f32 %v475, %v523
        %v533 = vadd.f32 %v476, %v524
        %v534 = vadd.f32 %v477, %v525
        %v535 = vadd.f32 %v478, %v526
        %v536 = vadd.f32 %v479, %v527
        %v537 = vadd.f32 %v480, %v528
        %539 = vset.pattern.permute.xlu0 5
        %540 = vperm.xlu0 %539, %v303
        %v541 = vpop.permute.xlu0 %540
        %544 = vset.pattern.permute.xlu0 5
        %545 = vperm.xlu0 %544, %v304
        %v546 = vpop.permute.xlu0 %545
        %549 = vset.pattern.permute.xlu0 5
        %550 = vperm.xlu0 %549, %v305
        %v551 = vpop.permute.xlu0 %550
        %v553 = vadd.f32 %v529, %v541
        %v554 = vadd.f32 %v530, %v541
        %v555 = vadd.f32 %v531, %v541
        %v556 = vadd.f32 %v532, %v546
        %v557 = vadd.f32 %v533, %v546
        %v558 = vadd.f32 %v534, %v546
        %v559 = vadd.f32 %v535, %v551
        %v560 = vadd.f32 %v536, %v551
        %v561 = vadd.f32 %v537, %v551
        %v562 = vmax.f32 %v553, 0.0
        %v563 = vmax.f32 %v554, 0.0
        %v564 = vmax.f32 %v555, 0.0
        %v565 = vmax.f32 %v556, 0.0
        %v566 = vmax.f32 %v557, 0.0
        %v567 = vmax.f32 %v558, 0.0
        %v568 = vmax.f32 %v559, 0.0
        %v569 = vmax.f32 %v560, 0.0
        %v570 = vmax.f32 %v561, 0.0
        %v571 = vmin.f32 %v562, 6.0
        %v572 = vmin.f32 %v563, 6.0
        %v573 = vmin.f32 %v564, 6.0
        %v574 = vmin.f32 %v565, 6.0
        %v575 = vmin.f32 %v566, 6.0
        %v576 = vmin.f32 %v567, 6.0
        %v577 = vmin.f32 %v568, 6.0
        %v578 = vmin.f32 %v569, 6.0
        %v579 = vmin.f32 %v570, 6.0
        %v580 = vld [vmem:[%s298] ss:$4 sm:$0x3]
        %s581 = scalar_lea.vmem %s298, 1
        %v582 = vld [vmem:[%s581] ss:$4 sm:$0x3]
        %s583 = scalar_lea.vmem %s298, 2
        %v584 = vld [vmem:[%s583] ss:$4 sm:$0x3]
        %s585 = scalar_lea.vmem %s298, 3
        %v586 = vld [vmem:[%s585] ss:$4 sm:$0x3]
        %587 = vset.pattern.permute.xlu0 1
        %588 = vperm.xlu0 %587, %v303
        %v589 = vpop.permute.xlu0 %588
        %591 = vset.pattern.permute.xlu0 1
        %592 = vperm.xlu0 %591, %v304
        %v593 = vpop.permute.xlu0 %592
        %595 = vset.pattern.permute.xlu0 1
        %596 = vperm.xlu0 %595, %v305
        %v597 = vpop.permute.xlu0 %596
        %v599 = vmul.f32 %v571, %v589
        %v600 = vmul.f32 %v572, %v589
        %v601 = vmul.f32 %v573, %v589
        %v602 = vmul.f32 %v574, %v593
        %v603 = vmul.f32 %v575, %v593
        %v604 = vmul.f32 %v576, %v593
        %v605 = vmul.f32 %v577, %v597
        %v606 = vmul.f32 %v578, %v597
        %v607 = vmul.f32 %v579, %v597
        %v609 = vlaneseq
        %v610 = vshrl.u32 %v609, 7
        %v611 = vsub.s32 0, %v610
        %v612 = vrot.slane %v580, %v611
        %v613 = vlaneseq
        %v614 = vshrl.u32 %v613, 7
        %v615 = vsub.s32 1, %v614
        %v616 = vrot.slane %v580, %v615
        %617 = vrot.lane.b32.xlu0 %v612, 15
        %v618 = vpop.permute.xlu0 %617
        %619 = vrot.lane.b32.xlu0 %v616, 15
        %v620 = vpop.permute.xlu0 %619
        %vm621 = vcmask 121856
        %v622 = vsel %vm621, %v618, %v620
        %v626 = vmul.f32 %v571, %v618
        %v627 = vmul.f32 %v572, %v622
        %v628 = vmul.f32 %v573, %v620
        %v629 = vmul.f32 %v574, %v618
        %v630 = vmul.f32 %v575, %v622
        %v631 = vmul.f32 %v576, %v620
        %v632 = vmul.f32 %v577, %v618
        %v633 = vmul.f32 %v578, %v622
        %v634 = vmul.f32 %v579, %v620
        %635 = vset.pattern.permute.xlu0 0
        %636 = vperm.xlu0 %635, %v303
        %v637 = vpop.permute.xlu0 %636
        %639 = vset.pattern.permute.xlu0 0
        %640 = vperm.xlu0 %639, %v304
        %v641 = vpop.permute.xlu0 %640
        %643 = vset.pattern.permute.xlu0 0
        %644 = vperm.xlu0 %643, %v305
        %v645 = vpop.permute.xlu0 %644
        %v647 = vmul.f32 %v626, %v637
        %v648 = vmul.f32 %v627, %v637
        %v649 = vmul.f32 %v628, %v637
        %v650 = vmul.f32 %v629, %v641
        %v651 = vmul.f32 %v630, %v641
        %v652 = vmul.f32 %v631, %v641
        %v653 = vmul.f32 %v632, %v645
        %v654 = vmul.f32 %v633, %v645
        %v655 = vmul.f32 %v634, %v645
        %665 = vrot.lane.b32.xlu0 %v647, 1
        %v666 = vpop.permute.xlu0 %665
        %667 = vrot.lane.b32.xlu0 %v648, 1
        %v668 = vpop.permute.xlu0 %667
        %669 = vrot.lane.b32.xlu0 %v649, 1
        %v670 = vpop.permute.xlu0 %669
        %671 = vrot.lane.b32.xlu0 %v650, 1
        %v672 = vpop.permute.xlu0 %671
        %673 = vrot.lane.b32.xlu0 %v651, 1
        %v674 = vpop.permute.xlu0 %673
        %675 = vrot.lane.b32.xlu0 %v652, 1
        %v676 = vpop.permute.xlu0 %675
        %677 = vrot.lane.b32.xlu0 %v653, 1
        %v678 = vpop.permute.xlu0 %677
        %679 = vrot.lane.b32.xlu0 %v654, 1
        %v680 = vpop.permute.xlu0 %679
        %681 = vrot.lane.b32.xlu0 %v655, 1
        %v682 = vpop.permute.xlu0 %681
        %vm683 = vcmask 7168
        %v684 = vsel %vm683, %v666, %v668
        %v685 = vsel %vm683, %v668, %v670
        %v686 = vsel %vm683, %v672, %v674
        %v687 = vsel %vm683, %v674, %v676
        %v688 = vsel %vm683, %v678, %v680
        %v689 = vsel %vm683, %v680, %v682
        %v699 = vadd.f32 %v599, %v666
        %v700 = vadd.f32 %v600, %v684
        %v701 = vadd.f32 %v601, %v685
        %v702 = vadd.f32 %v602, %v672
        %v703 = vadd.f32 %v603, %v686
        %v704 = vadd.f32 %v604, %v687
        %v705 = vadd.f32 %v605, %v678
        %v706 = vadd.f32 %v606, %v688
        %v707 = vadd.f32 %v607, %v689
        %v709 = vlaneseq
        %v710 = vshrl.u32 %v709, 7
        %v711 = vsub.s32 0, %v710
        %v712 = vrot.slane %v582, %v711
        %v713 = vlaneseq
        %v714 = vshrl.u32 %v713, 7
        %v715 = vsub.s32 1, %v714
        %v716 = vrot.slane %v582, %v715
        %717 = vrot.lane.b32.xlu0 %v712, 17
        %v718 = vpop.permute.xlu0 %717
        %719 = vrot.lane.b32.xlu0 %v716, 17
        %v720 = vpop.permute.xlu0 %719
        %vm721 = vcmask 138240
        %v722 = vsel %vm721, %v718, %v720
        %v726 = vmul.f32 %v571, %v718
        %v727 = vmul.f32 %v572, %v722
        %v728 = vmul.f32 %v573, %v720
        %v729 = vmul.f32 %v574, %v718
        %v730 = vmul.f32 %v575, %v722
        %v731 = vmul.f32 %v576, %v720
        %v732 = vmul.f32 %v577, %v718
        %v733 = vmul.f32 %v578, %v722
        %v734 = vmul.f32 %v579, %v720
        %735 = vset.pattern.permute.xlu0 2
        %736 = vperm.xlu0 %735, %v303
        %v737 = vpop.permute.xlu0 %736
        %739 = vset.pattern.permute.xlu0 2
        %740 = vperm.xlu0 %739, %v304
        %v741 = vpop.permute.xlu0 %740
        %743 = vset.pattern.permute.xlu0 2
        %744 = vperm.xlu0 %743, %v305
        %v745 = vpop.permute.xlu0 %744
        %v747 = vmul.f32 %v726, %v737
        %v748 = vmul.f32 %v727, %v737
        %v749 = vmul.f32 %v728, %v737
        %v750 = vmul.f32 %v729, %v741
        %v751 = vmul.f32 %v730, %v741
        %v752 = vmul.f32 %v731, %v741
        %v753 = vmul.f32 %v732, %v745
        %v754 = vmul.f32 %v733, %v745
        %v755 = vmul.f32 %v734, %v745
        %765 = vrot.lane.b32.xlu0 %v747, 127
        %v766 = vpop.permute.xlu0 %765
        %767 = vrot.lane.b32.xlu0 %v748, 127
        %v768 = vpop.permute.xlu0 %767
        %769 = vrot.lane.b32.xlu0 %v749, 127
        %v770 = vpop.permute.xlu0 %769
        %771 = vrot.lane.b32.xlu0 %v750, 127
        %v772 = vpop.permute.xlu0 %771
        %773 = vrot.lane.b32.xlu0 %v751, 127
        %v774 = vpop.permute.xlu0 %773
        %775 = vrot.lane.b32.xlu0 %v752, 127
        %v776 = vpop.permute.xlu0 %775
        %777 = vrot.lane.b32.xlu0 %v753, 127
        %v778 = vpop.permute.xlu0 %777
        %779 = vrot.lane.b32.xlu0 %v754, 127
        %v780 = vpop.permute.xlu0 %779
        %781 = vrot.lane.b32.xlu0 %v755, 127
        %v782 = vpop.permute.xlu0 %781
        %vm783 = vcmask 1039360
        %v784 = vsel %vm783, %v766, %v768
        %v785 = vsel %vm783, %v768, %v770
        %v786 = vsel %vm783, %v772, %v774
        %v787 = vsel %vm783, %v774, %v776
        %v788 = vsel %vm783, %v778, %v780
        %v789 = vsel %vm783, %v780, %v782
        %v799 = vadd.f32 %v699, %v784
        %v800 = vadd.f32 %v700, %v785
        %v801 = vadd.f32 %v701, %v770
        %v802 = vadd.f32 %v702, %v786
        %v803 = vadd.f32 %v703, %v787
        %v804 = vadd.f32 %v704, %v776
        %v805 = vadd.f32 %v705, %v788
        %v806 = vadd.f32 %v706, %v789
        %v807 = vadd.f32 %v707, %v782
        %v809 = vlaneseq
        %v810 = vshrl.u32 %v809, 7
        %v811 = vsub.s32 0, %v810
        %v812 = vrot.slane %v584, %v811
        %v813 = vlaneseq
        %v814 = vshrl.u32 %v813, 7
        %v815 = vsub.s32 1, %v814
        %v816 = vrot.slane %v584, %v815
        %v819 = vmul.f32 %v571, %v812
        %v820 = vmul.f32 %v572, %v816
        %v821 = vmul.f32 %v574, %v812
        %v822 = vmul.f32 %v575, %v816
        %v823 = vmul.f32 %v577, %v812
        %v824 = vmul.f32 %v578, %v816
        %825 = vset.pattern.permute.xlu0 3
        %826 = vperm.xlu0 %825, %v303
        %v827 = vpop.permute.xlu0 %826
        %829 = vset.pattern.permute.xlu0 3
        %830 = vperm.xlu0 %829, %v304
        %v831 = vpop.permute.xlu0 %830
        %833 = vset.pattern.permute.xlu0 3
        %834 = vperm.xlu0 %833, %v305
        %v835 = vpop.permute.xlu0 %834
        %v837 = vmul.f32 %v819, %v827
        %v838 = vmul.f32 %v820, %v827
        %v839 = vmul.f32 %v821, %v831
        %v840 = vmul.f32 %v822, %v831
        %v841 = vmul.f32 %v823, %v835
        %v842 = vmul.f32 %v824, %v835
        %849 = vrot.lane.b32.xlu0 %v837, 16
        %v850 = vpop.permute.xlu0 %849
        %851 = vrot.lane.b32.xlu0 %v838, 16
        %v852 = vpop.permute.xlu0 %851
        %853 = vrot.lane.b32.xlu0 %v839, 16
        %v854 = vpop.permute.xlu0 %853
        %855 = vrot.lane.b32.xlu0 %v840, 16
        %v856 = vpop.permute.xlu0 %855
        %857 = vrot.lane.b32.xlu0 %v841, 16
        %v858 = vpop.permute.xlu0 %857
        %859 = vrot.lane.b32.xlu0 %v842, 16
        %v860 = vpop.permute.xlu0 %859
        %vm861 = vcmask 130048
        %v862 = vsel %vm861, %v850, %v852
        %v863 = vsel %vm861, %v854, %v856
        %v864 = vsel %vm861, %v858, %v860
        %v874 = vadd.f32 %v799, %v850
        %v875 = vadd.f32 %v800, %v862
        %v876 = vadd.f32 %v801, %v852
        %v877 = vadd.f32 %v802, %v854
        %v878 = vadd.f32 %v803, %v863
        %v879 = vadd.f32 %v804, %v856
        %v880 = vadd.f32 %v805, %v858
        %v881 = vadd.f32 %v806, %v864
        %v882 = vadd.f32 %v807, %v860
        %v884 = vlaneseq
        %v885 = vshrl.u32 %v884, 7
        %v886 = vsub.s32 0, %v885
        %v887 = vrot.slane %v586, %v886
        %v888 = vlaneseq
        %v889 = vshrl.u32 %v888, 7
        %v890 = vsub.s32 1, %v889
        %v891 = vrot.slane %v586, %v890
        %892 = vrot.lane.b32.xlu0 %v887, 32
        %v893 = vpop.permute.xlu0 %892
        %894 = vrot.lane.b32.xlu0 %v891, 32
        %v895 = vpop.permute.xlu0 %894
        %vm896 = vcmask 261120
        %v897 = vsel %vm896, %v893, %v895
        %v901 = vmul.f32 %v571, %v893
        %v902 = vmul.f32 %v572, %v897
        %v903 = vmul.f32 %v573, %v895
        %v904 = vmul.f32 %v574, %v893
        %v905 = vmul.f32 %v575, %v897
        %v906 = vmul.f32 %v576, %v895
        %v907 = vmul.f32 %v577, %v893
        %v908 = vmul.f32 %v578, %v897
        %v909 = vmul.f32 %v579, %v895
        %910 = vset.pattern.permute.xlu0 4
        %911 = vperm.xlu0 %910, %v303
        %v912 = vpop.permute.xlu0 %911
        %914 = vset.pattern.permute.xlu0 4
        %915 = vperm.xlu0 %914, %v304
        %v916 = vpop.permute.xlu0 %915
        %918 = vset.pattern.permute.xlu0 4
        %919 = vperm.xlu0 %918, %v305
        %v920 = vpop.permute.xlu0 %919
        %v922 = vmul.f32 %v901, %v912
        %v923 = vmul.f32 %v902, %v912
        %v924 = vmul.f32 %v903, %v912
        %v925 = vmul.f32 %v904, %v916
        %v926 = vmul.f32 %v905, %v916
        %v927 = vmul.f32 %v906, %v916
        %v928 = vmul.f32 %v907, %v920
        %v929 = vmul.f32 %v908, %v920
        %v930 = vmul.f32 %v909, %v920
        %940 = vrot.lane.b32.xlu0 %v922, 112
        %v941 = vpop.permute.xlu0 %940
        %942 = vrot.lane.b32.xlu0 %v923, 112
        %v943 = vpop.permute.xlu0 %942
        %944 = vrot.lane.b32.xlu0 %v924, 112
        %v945 = vpop.permute.xlu0 %944
        %946 = vrot.lane.b32.xlu0 %v925, 112
        %v947 = vpop.permute.xlu0 %946
        %948 = vrot.lane.b32.xlu0 %v926, 112
        %v949 = vpop.permute.xlu0 %948
        %950 = vrot.lane.b32.xlu0 %v927, 112
        %v951 = vpop.permute.xlu0 %950
        %952 = vrot.lane.b32.xlu0 %v928, 112
        %v953 = vpop.permute.xlu0 %952
        %954 = vrot.lane.b32.xlu0 %v929, 112
        %v955 = vpop.permute.xlu0 %954
        %956 = vrot.lane.b32.xlu0 %v930, 112
        %v957 = vpop.permute.xlu0 %956
        %vm958 = vcmask 916480
        %v959 = vsel %vm958, %v941, %v943
        %v960 = vsel %vm958, %v943, %v945
        %v961 = vsel %vm958, %v947, %v949
        %v962 = vsel %vm958, %v949, %v951
        %v963 = vsel %vm958, %v953, %v955
        %v964 = vsel %vm958, %v955, %v957
        %v974 = vadd.f32 %v874, %v959
        %v975 = vadd.f32 %v875, %v960
        %v976 = vadd.f32 %v876, %v945
        %v977 = vadd.f32 %v877, %v961
        %v978 = vadd.f32 %v878, %v962
        %v979 = vadd.f32 %v879, %v951
        %v980 = vadd.f32 %v880, %v963
        %v981 = vadd.f32 %v881, %v964
        %v982 = vadd.f32 %v882, %v957
        %983 = vset.pattern.permute.xlu0 6
        %984 = vperm.xlu0 %983, %v303
        %v985 = vpop.permute.xlu0 %984
        %987 = vset.pattern.permute.xlu0 6
        %988 = vperm.xlu0 %987, %v304
        %v989 = vpop.permute.xlu0 %988
        %991 = vset.pattern.permute.xlu0 6
        %992 = vperm.xlu0 %991, %v305
        %v993 = vpop.permute.xlu0 %992
        %v995 = vadd.f32 %v974, %v985
        %v996 = vadd.f32 %v975, %v985
        %v997 = vadd.f32 %v976, %v985
        %v998 = vadd.f32 %v977, %v989
        %v999 = vadd.f32 %v978, %v989
        %v1000 = vadd.f32 %v979, %v989
        %v1001 = vadd.f32 %v980, %v993
        %v1002 = vadd.f32 %v981, %v993
        %v1003 = vadd.f32 %v982, %v993
        %v1004 = vmax.f32 %v995, 0.0
        %v1005 = vmax.f32 %v996, 0.0
        %v1006 = vmax.f32 %v997, 0.0
        %v1007 = vmax.f32 %v998, 0.0
        %v1008 = vmax.f32 %v999, 0.0
        %v1009 = vmax.f32 %v1000, 0.0
        %v1010 = vmax.f32 %v1001, 0.0
        %v1011 = vmax.f32 %v1002, 0.0
        %v1012 = vmax.f32 %v1003, 0.0
        %v1013 = vmin.f32 %v1004, 6.0
        %v1014 = vmin.f32 %v1005, 6.0
        %v1015 = vmin.f32 %v1006, 6.0
        %v1016 = vmin.f32 %v1007, 6.0
        %v1017 = vmin.f32 %v1008, 6.0
        %v1018 = vmin.f32 %v1009, 6.0
        %v1019 = vmin.f32 %v1010, 6.0
        %v1020 = vmin.f32 %v1011, 6.0
        %v1021 = vmin.f32 %v1012, 6.0
        %v1022 = vld [vmem:[%s4] sm:$0x3]
        %v1023 = vpack.c.bf16 %v1016, %v1013
        %v1024 = vpack.c.bf16 %v1017, %v1014
        %v1025 = vpack.c.bf16 %v1018, %v1015
        %v1026 = vpack.c.bf16 %v1019, %v1019
        %v1027 = vpack.c.bf16 %v1020, %v1020
        %v1028 = vpack.c.bf16 %v1021, %v1021
        %v1029 = vld [vmem:[%s5] sm:$0xf]
        %1031 = vset.pattern.permute.xlu0 0
        %1032 = vperm.xlu0 %1031, %v1029
        %v1033 = vpop.permute.xlu0 %1032
        %1041 = vrot.lane.b32.xlu0 %v1023, 112
        %v1042 = vpop.permute.xlu0 %1041
        %1043 = vrot.lane.b32.xlu0 %v1024, 112
        %v1044 = vpop.permute.xlu0 %1043
        %1045 = vrot.lane.b32.xlu0 %v1025, 112
        %v1046 = vpop.permute.xlu0 %1045
        %1047 = vrot.lane.b32.xlu0 %v1026, 112
        %v1048 = vpop.permute.xlu0 %1047
        %1049 = vrot.lane.b32.xlu0 %v1027, 112
        %v1050 = vpop.permute.xlu0 %1049
        %1051 = vrot.lane.b32.xlu0 %v1028, 112
        %v1052 = vpop.permute.xlu0 %1051
        %vm1053 = vcmask 916480
        %v1054 = vsel %vm1053, %v1042, %v1044
        %v1055 = vsel %vm1053, %v1044, %v1046
        %v1056 = vsel %vm1053, %v1048, %v1050
        %v1057 = vsel %vm1053, %v1050, %v1052
        %vm1060 = vcmask 195584
        %v1062 = vsel %vm1060, %v1022, 0
        %vm1064 = vcmask 1043456
        %v1066 = vsel %vm1064, %v1056, 0
        %v1069 = vsel %vm1064, %v1057, 0
        %1071 = vmatprep.subr.bf16.mxu0 0
        %1072 = vmatpush1.bf16.msra.mxu0 0
        %1073 = vmatprep.subr.bf16.mxu0 0
        %1074 = vmatpush1.bf16.msra.mxu0 0
        %1075 = vmatprep.subr.bf16.mxu0 0
        %1076 = vmatpush1.bf16.msra.mxu0 0
        %1077 = vmatprep.subr.bf16.mxu0 0
        %1078 = vmatpush1.bf16.msra.mxu0 0
        %1079 = vmatprep.subr.bf16.mxu0 0
        %1080 = vmatpush1.bf16.msra.mxu0 0
        %1081 = vmatprep.subr.bf16.mxu0 0
        %1082 = vmatpush1.bf16.msra.mxu0 0
        %1083 = vmatprep.subr.bf16.mxu0 %v1069
        %1084 = vmatpush1.bf16.msra.mxu0 %v1066
        %1085 = vmatprep.subr.bf16.mxu0 %v1055
        %1086 = vmatpush1.bf16.msra.mxu0 %v1054
        %1087 = vmatprep.subr.bf16.mxu0 0
        %1088 = vmatpush2.bf16.msra.mxu0 0
        %1089 = vmatprep.subr.bf16.mxu0 0
        %1090 = vmatpush2.bf16.msra.mxu0 0
        %1091 = vmatprep.subr.bf16.mxu0 0
        %1092 = vmatpush2.bf16.msra.mxu0 0
        %1093 = vmatprep.subr.bf16.mxu0 0
        %1094 = vmatpush2.bf16.msra.mxu0 0
        %1095 = vmatprep.subr.bf16.mxu0 0
        %1096 = vmatpush2.bf16.msra.mxu0 0
        %1097 = vmatprep.subr.bf16.mxu0 0
        %1098 = vmatpush2.bf16.msra.mxu0 0
        %1099 = vmatprep.subr.bf16.mxu0 0
        %1100 = vmatpush2.bf16.msra.mxu0 0
        %1101 = vmatprep.subr.bf16.mxu0 0
        %1102 = vmatpush2.bf16.msra.mxu0 0
        %1103 = vmatprep.mubr.bf16.mxu0 0
        %1104 = vmatmul.mubr.bf16.gmra.mxu0 %v1062
        %v1105 = vpop.f32.mrf.mxu0
        %v1106 = vadd.f32 %v1033, %v1105
        %v1107 = vpop.f32.mrf.mxu0
        %v1108 = vadd.f32 %v1033, %v1107
        %v1109 = vpop.f32.mrf.mxu0
        %v1110 = vpop.f32.mrf.mxu0
        %1111 = vdwg.mxu0
        %v1112 = vcombine.high %v312, %v312
        %1113 = vrot.lane.b32.xlu0 %v312, 112
        %v1114 = vpop.permute.xlu0 %1113
        %1115 = vrot.lane.b32.xlu0 %v1112, 112
        %v1116 = vpop.permute.xlu0 %1115
        %1117 = vrot.lane.b32.xlu0 %v313, 112
        %v1118 = vpop.permute.xlu0 %1117
        %v1119 = vsel %vm958, %v1114, %v1116
        %v1120 = vsel %vm958, %v1116, %v1118
        %v1123 = vadd.f32 %v1106, %v1119
        %v1124 = vadd.f32 %v1108, %v1120
        %v1127 = vcombine.low %v1123, %v1124
        %1129 = vst [vmem:[%s284] sm:$0xff] %v1127
        %s1130 = sand.u32 %s180, 1
        %s1131 = scalar_lea.sflag [#allocation3], %s1130
        %s1132 = sand.u32 %s180, 1
        %s1133 = smul.addr %s1132, 8
        %s1134 = scalar_lea.vmem [#allocation2], %s1133
        // Predicated region
        $region45: #{tpu_custom_call.1} parent=43 // pred_check
          %p1135 = pneg %p190
        $region46: #{tpu_custom_call.1} parent=43 // pred_check_branch
          %1137 = sbr.rel (%p1135) target = $region48
        $region47: #{tpu_custom_call.1} parent=43 // pred_region
          %s1138 = smul.u32 2, %s25
          %s1140 = ssub.s32 128, 128
          %1141 = vsyncadd %s1131, %s1140
          %s1142 = smul.addr %s24, 2
          %s1143 = sadd.s32 %s1138, %s1142
          %s1144 = smul.addr %s1143, 64
          %s1145 = scalar_lea.hbm %s6, %s1144
          %s1147 = sshll.u32 %s1134, 4
          %s1148 = int_to_ptr.vmem [resolvable:$true] %s1147
          %1150 = dma.vmem_to_hbm [thread:$0]  %s1148, 128, %s1145, %s1131
        $region48: #{tpu_custom_call.1} parent=43 // pred_fallthru
          _
      $region44: #{tpu_custom_call.1} parent=5 // pred_fallthru
        _
      %p1151 = scmp.le.s32.totalorder 2, %s15
      // Predicated region
      $region49: #{tpu_custom_call.1} parent=5 // pred_check
        %p1152 = pneg %p1151
      $region50: #{tpu_custom_call.1} parent=5 // pred_check_branch
        %1154 = sbr.rel (%p1152) target = $region52
      $region51: #{tpu_custom_call.1} parent=5 // pred_region
        %s1155 = ssub.s32 %s15, 2
        // Predicated region
        $region53: #{tpu_custom_call.1} parent=51 // pred_check
          %p1156 = pneg %p196
        $region54: #{tpu_custom_call.1} parent=51 // pred_check_branch
          %1158 = sbr.rel (%p1156) target = $region56
        $region55: #{tpu_custom_call.1} parent=51 // pred_region
          %s1159 = sand.u32 %s181, 1
          %s1160 = scalar_lea.sflag [#allocation3], %s1159
          %s1161 = sand.u32 %s181, 1
          %s1162 = smul.addr %s1161, 8
          %s1163 = scalar_lea.vmem [#allocation2], %s1162
          %1164 = dma.done %s1160, 128
        $region56: #{tpu_custom_call.1} parent=51 // pred_fallthru
          _
      $region52: #{tpu_custom_call.1} parent=5 // pred_fallthru
        _
    $region6: #{tpu_custom_call.1} parent=1 // loop_footer
      %s19 = sadd.s32 1, %s15
    $region7: #{tpu_custom_call.1} parent=1 // loop_footer_branch
      %14 = sbr.rel target = $region3
    $region8: #{tpu_custom_call.1} parent=1 // loop_exit
      _
    %1165 = vsyncpa [#allocation3], 1
    %s1166 = scalar_lea.sflag [#allocation3], 1
    %1167 = vsyncpa %s1166, 1

</llo_original>
